<compile_context>
chip_gen: v6e
topology: v6e:2x2x1
jax: 0.10.0
libtpu: 0.0.40
codegen_flags: <defaults>
</compile_context>

<pallas_src>
import numpy as np
import jax
import jax.numpy as jnp
from jax.experimental import pallas as pl
from jax.experimental.pallas import tpu as pltpu


def _round_up(x, m):
    return (x + m - 1) // m * m


def _matmul_kernel(x_ref, y_ref, o_ref, acc_ref):
    """One (tm, tn) output tile, accumulated over the K grid axis.

    x_ref:   (1, tm, tk)   input tile
    y_ref:   (1, tk, tn)   weight tile
    o_ref:   (1, tm, tn)   output tile (resident across the K axis)
    acc_ref: (tm, tn) f32  VMEM accumulator scratch
    """
    @pl.when(pl.program_id(3) == 0)
    def _init():
        acc_ref[...] = jnp.zeros_like(acc_ref)

    acc_ref[...] += jnp.dot(x_ref[0], y_ref[0],
                            preferred_element_type=jnp.float32)

    @pl.when(pl.program_id(3) == pl.num_programs(3) - 1)
    def _store():
        o_ref[0] = acc_ref[...].astype(o_ref.dtype)


def _pallas_bmm(x3, y3, out_dtype, tm=None, tn=None, tk=None):
    """Batched matmul core: x3 (B, M, K) @ y3 (By, K, N), By in {1, B}."""
    B, M, K = x3.shape
    By, K2, N = y3.shape
    assert K == K2 and By in (1, B)

    # Tile heuristics: MXU/lane friendly, bounded for v7x's 64 MiB VMEM.
    if tm is None:
        tm = 256 if M >= 256 else _round_up(M, 8)
    if tn is None:
        tn = 256 if N >= 256 else _round_up(N, 128)
    if tk is None:
        tk = 512 if K >= 512 else _round_up(K, 128)

    Mp, Np, Kp = _round_up(M, tm), _round_up(N, tn), _round_up(K, tk)
    if (Mp, Kp) != (M, K):
        x3 = jnp.pad(x3, ((0, 0), (0, Mp - M), (0, Kp - K)))
    if (Kp, Np) != (K, N):
        y3 = jnp.pad(y3, ((0, 0), (0, Kp - K), (0, Np - N)))

    grid = (B, Mp // tm, Np // tn, Kp // tk)

    if By == 1:
        y_map = lambda b, i, j, k: (0, k, j)
    else:
        y_map = lambda b, i, j, k: (b, k, j)

    out = pl.pallas_call(
        _matmul_kernel,
        out_shape=jax.ShapeDtypeStruct((B, Mp, Np), out_dtype),
        grid_spec=pltpu.PrefetchScalarGridSpec(
            num_scalar_prefetch=0,
            grid=grid,
            in_specs=[
                pl.BlockSpec((1, tm, tk), lambda b, i, j, k: (b, i, k)),
                pl.BlockSpec((1, tk, tn), y_map),
            ],
            out_specs=pl.BlockSpec((1, tm, tn), lambda b, i, j, k: (b, i, j)),
            scratch_shapes=[pltpu.VMEM((tm, tn), jnp.float32)],
        ),
        compiler_params=pltpu.CompilerParams(
            dimension_semantics=("parallel", "parallel", "parallel",
                                 "arbitrary")),
    )(x3, y3)

    return out[:, :M, :N]


def pallas_matmul(X, Y, tm=None, tn=None, tk=None):
    """torch.matmul(X, Y) semantics (float dtypes)."""
    x = jnp.asarray(X)
    y = jnp.asarray(Y)
    out_dtype = jnp.result_type(x.dtype, y.dtype)

    x_was_1d = x.ndim == 1
    y_was_1d = y.ndim == 1
    if x_was_1d:
        x = x[None, :]
    if y_was_1d:
        y = y[:, None]

    if y.ndim == 2:
        # (..., M, K) @ (K, N): collapse all leading dims of x into one M axis.
        lead = x.shape[:-1]
        M = int(np.prod(lead)) if lead else 1
        x3 = x.reshape(1, M, x.shape[-1])
        y3 = y[None]
        out = _pallas_bmm(x3, y3, out_dtype, tm, tn, tk)
        out = out.reshape(lead + (y.shape[-1],))
    else:
        # Batched matmul with broadcasting over leading batch dims.
        bshape = jnp.broadcast_shapes(x.shape[:-2], y.shape[:-2])
        xb = jnp.broadcast_to(x, bshape + x.shape[-2:])
        yb = jnp.broadcast_to(y, bshape + y.shape[-2:])
        B = int(np.prod(bshape)) if bshape else 1
        x3 = xb.reshape(B, x.shape[-2], x.shape[-1])
        y3 = yb.reshape(B, y.shape[-2], y.shape[-1])
        out = _pallas_bmm(x3, y3, out_dtype, tm, tn, tk)
        out = out.reshape(bshape + (x.shape[-2], y.shape[-1]))

    if y_was_1d:
        out = out[..., 0]
    if x_was_1d:
        out = out[..., 0, :] if not y_was_1d else out[..., 0]
    return out


if __name__ == "__main__":
    key = jax.random.PRNGKey(0)
    k1, k2, k3, k4, k5, k6 = jax.random.split(key, 6)

    # Case 1: (B, S, K) @ (K, N) linear-style matmul. Small forced tiles make a
    # genuine multi-tile grid (4 M-tiles x 2 N-tiles x 2 K-tiles) at tiny shapes.
    X1 = jax.random.normal(k1, (2, 16, 256), jnp.float32).astype(jnp.bfloat16)
    Y1 = jax.random.normal(k2, (256, 256), jnp.float32).astype(jnp.bfloat16)
    out1 = jax.block_until_ready(pallas_matmul(X1, Y1, tm=8, tn=128, tk=128))
    ref1 = jnp.matmul(X1.astype(jnp.float32), Y1.astype(jnp.float32))
    assert out1.shape == ref1.shape and out1.dtype == jnp.bfloat16
    rel1 = (float(jnp.max(jnp.abs(out1.astype(jnp.float32) - ref1)))
            / float(jnp.max(jnp.abs(ref1))))
    assert rel1 < 3e-2, f"case1 rel err {rel1}"

    # Case 2: batched matmul, per-batch Y (broadcasting / batch-grid path).
    X2 = jax.random.normal(k3, (2, 8, 32), jnp.float32).astype(jnp.bfloat16)
    Y2 = jax.random.normal(k4, (2, 32, 64), jnp.float32).astype(jnp.bfloat16)
    out2 = jax.block_until_ready(pallas_matmul(X2, Y2))
    ref2 = jnp.matmul(X2.astype(jnp.float32), Y2.astype(jnp.float32))
    assert out2.shape == ref2.shape
    rel2 = (float(jnp.max(jnp.abs(out2.astype(jnp.float32) - ref2)))
            / float(jnp.max(jnp.abs(ref2))))
    assert rel2 < 3e-2, f"case2 rel err {rel2}"

    # Case 3: 1-D vector @ matrix (torch.matmul rank-promotion rule).
    v = jax.random.normal(k5, (64,), jnp.float32).astype(jnp.bfloat16)
    Y3 = jax.random.normal(k6, (64, 32), jnp.float32).astype(jnp.bfloat16)
    out3 = jax.block_until_ready(pallas_matmul(v, Y3))
    ref3 = jnp.matmul(v.astype(jnp.float32), Y3.astype(jnp.float32))
    assert out3.shape == (32,)
    rel3 = (float(jnp.max(jnp.abs(out3.astype(jnp.float32) - ref3)))
            / float(jnp.max(jnp.abs(ref3))))
    assert rel3 < 3e-2, f"case3 rel err {rel3}"

    # TODO(synk): integer-dtype torch.matmul (no MXU int path on v7x) is not
    # supported; float dtypes only.
    print("KERNEL_OK")
</pallas_src>

<mosaic_0001>
module attributes {stable_mosaic.version = 11 : i64} {
  func.func @_matmul_kernel(%arg0: i32, %arg1: i32, %arg2: i32, %arg3: i32, %arg4: memref<1x8x128xbf16, #tpu.memory_space<vmem>>, %arg5: memref<1x128x128xbf16, #tpu.memory_space<vmem>>, %arg6: memref<1x8x128xbf16, #tpu.memory_space<vmem>>, %arg7: memref<8x128xf32, #tpu.memory_space<vmem>>) attributes {dimension_semantics = [#tpu.dimension_semantics<parallel>, #tpu.dimension_semantics<parallel>, #tpu.dimension_semantics<parallel>, #tpu.dimension_semantics<arbitrary>], iteration_bounds = array<i64: 1, 4, 2, 2>, scalar_prefetch = 0 : i64, scratch_operands = 1 : i64, tpu.core_type = #tpu.core_type<tc>, window_params = [{transform_indices = @transform_0, window_bounds = array<i64: 1, 8, 128>}, {transform_indices = @transform_1, window_bounds = array<i64: 1, 128, 128>}, {transform_indices = @transform_2, window_bounds = array<i64: 1, 8, 128>}]} {
    %c0_i32 = arith.constant 0 : i32
    %0 = arith.cmpi eq, %arg3, %c0_i32 : i32
    %1 = arith.extui %0 : i1 to i32
    %c0_i32_0 = arith.constant 0 : i32
    %2 = arith.cmpi ne, %1, %c0_i32_0 : i32
    scf.if %2 {
      %cst_11 = arith.constant 0.000000e+00 : f32
      %14 = vector.broadcast %cst_11 : f32 to vector<8x128xf32>
      %c0_12 = arith.constant 0 : index
      %c0_13 = arith.constant 0 : index
      %15 = vector.load %arg7[%c0_12, %c0_13] : memref<8x128xf32, #tpu.memory_space<vmem>>, vector<8x128xf32>
      tpu.vector_store %arg7[%c0_12, %c0_13], %14 {strides = array<i32>} : memref<8x128xf32, #tpu.memory_space<vmem>>, vector<8x128xf32>,
    } else {
    }
    %c0 = arith.constant 0 : index
    %c0_1 = arith.constant 0 : index
    %3 = vector.load %arg7[%c0, %c0_1] : memref<8x128xf32, #tpu.memory_space<vmem>>, vector<8x128xf32>
    %c0_2 = arith.constant 0 : index
    %c0_3 = arith.constant 0 : index
    %c0_4 = arith.constant 0 : index
    %4 = vector.load %arg4[%c0_2, %c0_3, %c0_4] : memref<1x8x128xbf16, #tpu.memory_space<vmem>>, vector<1x8x128xbf16>
    %5 = vector.shape_cast %4 : vector<1x8x128xbf16> to vector<8x128xbf16>
    %c0_5 = arith.constant 0 : index
    %c0_6 = arith.constant 0 : index
    %c0_7 = arith.constant 0 : index
    %6 = vector.load %arg5[%c0_5, %c0_6, %c0_7] : memref<1x128x128xbf16, #tpu.memory_space<vmem>>, vector<1x128x128xbf16>
    %7 = vector.shape_cast %6 : vector<1x128x128xbf16> to vector<128x128xbf16>
    %cst = arith.constant dense<0.000000e+00> : vector<8x128xf32>
    %8 = tpu.matmul %5, %7, %cst {dimension_numbers = #tpu.dot_dimension_numbers<[1], [0], [0], [1], [0, 0, 1, 1], [], []>} : vector<8x128xbf16>, vector<128x128xbf16>, vector<8x128xf32> -> vector<8x128xf32>
    %9 = arith.addf %3, %8 : vector<8x128xf32>
    %c0_8 = arith.constant 0 : index
    %c0_9 = arith.constant 0 : index
    %10 = vector.load %arg7[%c0_8, %c0_9] : memref<8x128xf32, #tpu.memory_space<vmem>>, vector<8x128xf32>
    tpu.vector_store %arg7[%c0_8, %c0_9], %9 {strides = array<i32>} : memref<8x128xf32, #tpu.memory_space<vmem>>, vector<8x128xf32>,
    %c1_i32 = arith.constant 1 : i32
    %11 = arith.cmpi eq, %arg3, %c1_i32 : i32
    %12 = arith.extui %11 : i1 to i32
    %c0_i32_10 = arith.constant 0 : i32
    %13 = arith.cmpi ne, %12, %c0_i32_10 : i32
    scf.if %13 {
      %c0_11 = arith.constant 0 : index
      %c0_12 = arith.constant 0 : index
      %14 = vector.load %arg7[%c0_11, %c0_12] : memref<8x128xf32, #tpu.memory_space<vmem>>, vector<8x128xf32>
      %15 = arith.truncf %14 : vector<8x128xf32> to vector<8x128xbf16>
      %c0_13 = arith.constant 0 : index
      %c0_14 = arith.constant 0 : index
      %c0_15 = arith.constant 0 : index
      %16 = vector.load %arg6[%c0_13, %c0_14, %c0_15] : memref<1x8x128xbf16, #tpu.memory_space<vmem>>, vector<1x8x128xbf16>
      %17 = vector.shape_cast %16 : vector<1x8x128xbf16> to vector<8x128xbf16>
      %18 = vector.shape_cast %15 : vector<8x128xbf16> to vector<1x8x128xbf16>
      tpu.vector_store %arg6[%c0_13, %c0_14, %c0_15], %18 {strides = array<i32>} : memref<1x8x128xbf16, #tpu.memory_space<vmem>>, vector<1x8x128xbf16>,
    } else {
    }
    return
  }
  func.func @transform_0(%arg0: i32, %arg1: i32, %arg2: i32, %arg3: i32) -> (i32, i32, i32) {
    %c0_i32 = arith.constant 0 : i32
    return %arg0, %arg1, %arg3 : i32, i32, i32
  }
  func.func @transform_1(%arg0: i32, %arg1: i32, %arg2: i32, %arg3: i32) -> (i32, i32, i32) {
    %c0_i32 = arith.constant 0 : i32
    %c0_i32_0 = arith.constant 0 : i32
    return %c0_i32, %arg3, %arg2 : i32, i32, i32
  }
  func.func @transform_2(%arg0: i32, %arg1: i32, %arg2: i32, %arg3: i32) -> (i32, i32, i32) {
    %c0_i32 = arith.constant 0 : i32
    return %arg0, %arg1, %arg2 : i32, i32, i32
  }
}

</mosaic_0001>

<llo_original>
// kernel: tpu_custom_call.1
$region0: #{tpu_custom_call.1}
  #allocation0 [shape = 'u32[]', space=smem, size = 0x4, offset = 0x4, fixed_abs, tag = 'smem constant byte address 0x4 - core index']
  #allocation1 [shape = 'u32[144,128]{1,0:T(1,128)}', space=vmem, size = 0x12000, scoped, tag = 'internal scratch']
  #allocation2 [shape = 'f32[8,128]{1,0:T(8,128)}', space=vmem, size = 0x1000, scoped, tag = 'scratch operand']
  %s0 = inlined_call_operand.hbm [shape: bf16[1,32,256], index: 0, kind: input, shape index: {}]
  %s1 = inlined_call_operand.hbm [shape: bf16[1,256,256], index: 1, kind: input, shape index: {}]
  %s2 = inlined_call_operand.hbm [shape: bf16[1,32,256], index: 2, kind: output, shape index: {}]
  %s3 = sld [smem:[#allocation0]]
  $region57: #{tpu_custom_call.1} parent=0
    _
  %s5 = ssub.s32 1, %s3
  %s6 = scalar_select 0, %s5, %s3
  $region1: #{tpu_custom_call.1} parent=0
    #allocation3 [shape = 'u8[4096]{0}', space=vmem, size = 0x1000, scoped, tag = 'input window, operand 0']
    #allocation4 [shape = 's32[2]{0}', space=sflag, size = 0x8, scoped, tag = 'scoped memory for tpu_custom_call.1']
    #allocation5 [shape = 's32[2]{0}', space=sflag, size = 0x8, scoped, tag = 'scoped memory for tpu_custom_call.1']
    #allocation6 [shape = 'u8[65536]{0}', space=vmem, size = 0x10000, scoped, tag = 'input window, operand 1']
    #allocation7 [shape = 's32[2]{0}', space=sflag, size = 0x8, scoped, tag = 'scoped memory for tpu_custom_call.1']
    #allocation8 [shape = 'u8[4096]{0}', space=vmem, size = 0x1000, scoped, tag = 'output window, operand 0']
    %7 = vsyncpa [#allocation4], 0
    %s8 = scalar_lea.sflag [#allocation4], 1
    %9 = vsyncpa %s8, 0
    %10 = vsyncpa [#allocation7], 0
    %s11 = scalar_lea.sflag [#allocation7], 1
    %12 = vsyncpa %s11, 0
    %13 = vsyncpa [#allocation5], 0
    %s14 = scalar_lea.sflag [#allocation5], 1
    %15 = vsyncpa %s14, 0
    loop: start=0, step=1, limit=18
    $region2: #{tpu_custom_call.1} parent=1 // loop_pre_header
      _
    $region3: #{tpu_custom_call.1} parent=1 // loop_header
      %s17 = sphi 0, %s21
      %p18 = scmp.ge.s32.totalorder %s17, 18
      %s24 = sphi 0, %s50
      %s25 = sphi 0, %s46
      %s26 = sphi 0, %s42
      %s27 = sphi 0, %s38
      %s28 = sphi 0, %s24
      %s29 = sphi 0, %s25
      %s30 = sphi 0, %s26
      %s31 = sphi 0, %s27
      %s32 = sphi 0, %s28
      %s33 = sphi 0, %s29
      %s34 = sphi 0, %s30
      %s35 = sphi 0, %s31
      %s57 = sphi 0, %s59
      %s60 = sphi 0, %s57
      %s61 = sphi 0, %s60
      %s77 = sphi 0, %s61
      %s85 = sphi 0, %s87
      %s88 = sphi 0, %s85
      %s89 = sphi 0, %s88
      %s105 = sphi 0, %s89
      %s115 = sphi 0, %s117
      %s118 = sphi 0, %s115
      %s119 = sphi 0, %s118
      %s135 = sphi 0, %s119
    $region4: #{tpu_custom_call.1} parent=1 // loop_header_branch
      %20 = sbr.rel (%p18) target = $region8
    $region5: #{tpu_custom_call.1} parent=1 // loop_body
      %s22 = ssub.s32 %s17, 1
      %s23 = ssub.s32 %s17, 2
      %s36 = sadd.s32 1, %s27
      %p37 = scmp.ge.s32.totalorder %s36, 2
      %s38 = scalar_select %p37, 0, %s36
      %s39 = sadd.s32 1, %s26
      %s40 = scalar_select %p37, %s39, %s26
      %p41 = scmp.ge.s32.totalorder %s40, 2
      %s42 = scalar_select %p41, 0, %s40
      %s43 = sadd.s32 1, %s25
      %s44 = scalar_select %p41, %s43, %s25
      %p45 = scmp.ge.s32.totalorder %s44, 4
      %s46 = scalar_select %p45, 0, %s44
      %s47 = sadd.s32 1, %s24
      %s48 = scalar_select %p45, %s47, %s24
      %p49 = scmp.ge.s32.totalorder %s48, 1
      %s50 = scalar_select %p49, 0, %s48
      %s51 = ssub.s32 %s24, %s50
      %s52 = ssub.s32 %s25, %s46
      %s53 = sor.u32 %s51, %s52
      %s54 = ssub.s32 %s27, %s38
      %s55 = sor.u32 %s53, %s54
      %p56 = scmp.eq.s32.totalorder %s55, 0
      %s58 = sadd.s32 %s57, 1
      %s59 = scalar_select %p56, %s57, %s58
      %p62 = pneg %p56
      %p63 = scmp.eq.s32.totalorder %s17, 15
      %p64 = por %p62, %p63
      %p65 = scmp.ne.s32.totalorder %s57, %s60
      %p66 = scmp.eq.s32.totalorder %s17, 0
      %p67 = por %p65, %p66
      %p68 = scmp.ne.s32.totalorder %s57, %s60
      %p69 = scmp.eq.s32.totalorder %s22, 15
      %p70 = por %p68, %p69
      %p71 = scmp.ne.s32.totalorder %s60, %s61
      %p72 = scmp.eq.s32.totalorder %s22, 0
      %p73 = por %p71, %p72
      %p74 = scmp.ne.s32.totalorder %s60, %s61
      %p75 = scmp.eq.s32.totalorder %s23, 15
      %p76 = por %p74, %p75
      %p78 = scmp.ne.s32.totalorder %s61, %s77
      %p79 = scmp.eq.s32.totalorder %s23, 0
      %p80 = por %p78, %p79
      %s81 = ssub.s32 %s27, %s38
      %s82 = ssub.s32 %s26, %s42
      %s83 = sor.u32 %s81, %s82
      %p84 = scmp.eq.s32.totalorder %s83, 0
      %s86 = sadd.s32 %s85, 1
      %s87 = scalar_select %p84, %s85, %s86
      %p90 = pneg %p84
      %p91 = scmp.eq.s32.totalorder %s17, 15
      %p92 = por %p90, %p91
      %p93 = scmp.ne.s32.totalorder %s85, %s88
      %p94 = scmp.eq.s32.totalorder %s17, 0
      %p95 = por %p93, %p94
      %p96 = scmp.ne.s32.totalorder %s85, %s88
      %p97 = scmp.eq.s32.totalorder %s22, 15
      %p98 = por %p96, %p97
      %p99 = scmp.ne.s32.totalorder %s88, %s89
      %p100 = scmp.eq.s32.totalorder %s22, 0
      %p101 = por %p99, %p100
      %p102 = scmp.ne.s32.totalorder %s88, %s89
      %p103 = scmp.eq.s32.totalorder %s23, 15
      %p104 = por %p102, %p103
      %p106 = scmp.ne.s32.totalorder %s89, %s105
      %p107 = scmp.eq.s32.totalorder %s23, 0
      %p108 = por %p106, %p107
      %s109 = ssub.s32 %s24, %s50
      %s110 = ssub.s32 %s25, %s46
      %s111 = sor.u32 %s109, %s110
      %s112 = ssub.s32 %s26, %s42
      %s113 = sor.u32 %s111, %s112
      %p114 = scmp.eq.s32.totalorder %s113, 0
      %s116 = sadd.s32 %s115, 1
      %s117 = scalar_select %p114, %s115, %s116
      %p120 = pneg %p114
      %p121 = scmp.eq.s32.totalorder %s17, 15
      %p122 = por %p120, %p121
      %p123 = scmp.ne.s32.totalorder %s115, %s118
      %p124 = scmp.eq.s32.totalorder %s17, 0
      %p125 = por %p123, %p124
      %p126 = scmp.ne.s32.totalorder %s115, %s118
      %p127 = scmp.eq.s32.totalorder %s22, 15
      %p128 = por %p126, %p127
      %p129 = scmp.ne.s32.totalorder %s118, %s119
      %p130 = scmp.eq.s32.totalorder %s22, 0
      %p131 = por %p129, %p130
      %p132 = scmp.ne.s32.totalorder %s118, %s119
      %p133 = scmp.eq.s32.totalorder %s23, 15
      %p134 = por %p132, %p133
      %p136 = scmp.ne.s32.totalorder %s119, %s135
      %p137 = scmp.eq.s32.totalorder %s23, 0
      %p138 = por %p136, %p137
      %p139 = scmp.le.s32.totalorder 1, %s17
      %p140 = scmp.lt.s32.totalorder %s17, 17
      %p141 = pnand %p139, %p140
      %p142 = pneg %p141
      // Predicated region
      $region9: #{tpu_custom_call.1} parent=5 // pred_check
        _
      $region10: #{tpu_custom_call.1} parent=5 // pred_check_branch
        %144 = sbr.rel (%p141) target = $region12
      $region11: #{tpu_custom_call.1} parent=5 // pred_region
        %s145 = ssub.s32 %s17, 1
      $region12: #{tpu_custom_call.1} parent=5 // pred_fallthru
        _
      %p146 = scmp.lt.s32.totalorder %s17, 16
      // Predicated region
      $region13: #{tpu_custom_call.1} parent=5 // pred_check
        %p147 = pneg %p146
      $region14: #{tpu_custom_call.1} parent=5 // pred_check_branch
        %149 = sbr.rel (%p147) target = $region16
      $region15: #{tpu_custom_call.1} parent=5 // pred_region
        // Predicated region
        $region17: #{tpu_custom_call.1} parent=15 // pred_check
          %p150 = pneg %p67
        $region18: #{tpu_custom_call.1} parent=15 // pred_check_branch
          %152 = sbr.rel (%p150) target = $region20
        $region19: #{tpu_custom_call.1} parent=15 // pred_region
          %s153 = sand.u32 %s57, 1
          %s154 = scalar_lea.sflag [#allocation4], %s153
          %s155 = sand.u32 %s57, 1
          %s156 = smul.addr %s155, 4
          %s157 = scalar_lea.vmem [#allocation3], %s156
          %s159 = ssub.s32 64, 64
          %160 = vsyncadd %s154, %s159
          %s161 = smul.addr %s25, 2
          %s162 = sadd.s32 %s27, %s161
          %s163 = smul.addr %s24, 8
          %s164 = sadd.s32 %s162, %s163
          %s165 = smul.addr %s164, 64
          %s166 = scalar_lea.hbm %s0, %s165
          %s168 = sshll.u32 %s157, 4
          %s169 = int_to_ptr.vmem [resolvable:$true] %s168
          %171 = dma.hbm_to_vmem [thread:$0]  %s166, 64, %s169, %s154
        $region20: #{tpu_custom_call.1} parent=15 // pred_fallthru
          _
        // Predicated region
        $region21: #{tpu_custom_call.1} parent=15 // pred_check
          %p172 = pneg %p95
        $region22: #{tpu_custom_call.1} parent=15 // pred_check_branch
          %174 = sbr.rel (%p172) target = $region24
        $region23: #{tpu_custom_call.1} parent=15 // pred_region
          %s175 = sand.u32 %s85, 1
          %s176 = scalar_lea.sflag [#allocation7], %s175
          %s177 = sand.u32 %s85, 1
          %s178 = smul.addr %s177, 64
          %s179 = scalar_lea.vmem [#allocation6], %s178
          %s180 = smul.u32 16, %s27
          %s182 = ssub.s32 1024, 1024
          %183 = vsyncadd %s176, %s182
          %s184 = smul.addr %s180, 2
          %s185 = sadd.s32 %s26, %s184
          %s186 = smul.addr %s185, 64
          %s187 = scalar_lea.hbm %s1, %s186
          %s188 = sshll.u32 %s179, 4
          %s189 = int_to_ptr.vmem [resolvable:$true] %s188
          %194 = dma.hbm_to_vmem [thread:$0]  %s187, 1024, %s189, %s176, 128, 64, 4
        $region24: #{tpu_custom_call.1} parent=15 // pred_fallthru
          _
      $region16: #{tpu_custom_call.1} parent=5 // pred_fallthru
        _
      %p195 = scmp.le.s32.totalorder 1, %s17
      %p196 = scmp.lt.s32.totalorder %s17, 17
      %p197 = pnand %p195, %p196
      %p198 = pneg %p197
      // Predicated region
      $region25: #{tpu_custom_call.1} parent=5 // pred_check
        _
      $region26: #{tpu_custom_call.1} parent=5 // pred_check_branch
        %200 = sbr.rel (%p197) target = $region28
      $region27: #{tpu_custom_call.1} parent=5 // pred_region
        %s201 = ssub.s32 %s17, 1
        %s202 = sand.u32 %s60, 1
        %s203 = scalar_lea.sflag [#allocation4], %s202
        %s204 = sand.u32 %s60, 1
        %s205 = smul.addr %s204, 4
        %s206 = scalar_lea.vmem [#allocation3], %s205
        // Predicated region
        $region29: #{tpu_custom_call.1} parent=27 // pred_check
          %p207 = pneg %p73
        $region30: #{tpu_custom_call.1} parent=27 // pred_check_branch
          %209 = sbr.rel (%p207) target = $region32
        $region31: #{tpu_custom_call.1} parent=27 // pred_region
          %210 = dma.done %s203, 64
        $region32: #{tpu_custom_call.1} parent=27 // pred_fallthru
          _
        %s211 = sand.u32 %s88, 1
        %s212 = scalar_lea.sflag [#allocation7], %s211
        %s213 = sand.u32 %s88, 1
        %s214 = smul.addr %s213, 64
        %s215 = scalar_lea.vmem [#allocation6], %s214
        // Predicated region
        $region33: #{tpu_custom_call.1} parent=27 // pred_check
          %p216 = pneg %p101
        $region34: #{tpu_custom_call.1} parent=27 // pred_check_branch
          %218 = sbr.rel (%p216) target = $region36
        $region35: #{tpu_custom_call.1} parent=27 // pred_region
          %219 = dma.done %s212, 1024
        $region36: #{tpu_custom_call.1} parent=27 // pred_fallthru
          _
        %s220 = sand.u32 %s60, 1
        %s221 = scalar_lea.sflag [#allocation4], %s220
        %s222 = sand.u32 %s60, 1
        %s223 = smul.addr %s222, 4
        %s224 = scalar_lea.vmem [#allocation3], %s223
        %p225 = pneg %p73
        %p226 = pneg %p70
        %s227 = sand.u32 %s88, 1
        %s228 = scalar_lea.sflag [#allocation7], %s227
        %s229 = sand.u32 %s88, 1
        %s230 = smul.addr %s229, 64
        %s231 = scalar_lea.vmem [#allocation6], %s230
        %p232 = pneg %p101
        %p233 = pneg %p98
        %p234 = pneg %p131
        %p235 = pneg %p128
        %s236 = sand.u32 %s118, 1
        %s237 = scalar_lea.sflag [#allocation5], %s236
        %s238 = sand.u32 %s118, 1
        %s239 = smul.addr %s238, 4
        %s240 = scalar_lea.vmem [#allocation8], %s239
        %s241 = smul.u32 16, %s31
        %p243 = scmp.eq.s32.totalorder %s31, 0
        // Predicated region
        $region37: #{tpu_custom_call.1} parent=27 // pred_check
          %p244 = pneg %p243
        $region38: #{tpu_custom_call.1} parent=27 // pred_check_branch
          %246 = sbr.rel (%p244) target = $region40
        $region39: #{tpu_custom_call.1} parent=27 // pred_region
          %247 = vst [vmem:[#allocation2] sm:$0xff] 0.0
        $region40: #{tpu_custom_call.1} parent=27 // pred_fallthru
          _
        %v248 = vld [vmem:[#allocation2] sm:$0xff]
        %v249 = vld [vmem:[%s206] sm:$0xf]
        %v250 = vld [vmem:[%s215] sm:$0xf]
        %v251 = vld [vmem:[%s215 + $0x4] sm:$0xf]
        %v252 = vld [vmem:[%s215 + $0x8] sm:$0xf]
        %v253 = vld [vmem:[%s215 + $0xc] sm:$0xf]
        %v254 = vld [vmem:[%s215 + $0x10] sm:$0xf]
        %v255 = vld [vmem:[%s215 + $0x14] sm:$0xf]
        %v256 = vld [vmem:[%s215 + $0x18] sm:$0xf]
        %v257 = vld [vmem:[%s215 + $0x1c] sm:$0xf]
        %v258 = vld [vmem:[%s215 + $0x20] sm:$0xf]
        %v259 = vld [vmem:[%s215 + $0x24] sm:$0xf]
        %v260 = vld [vmem:[%s215 + $0x28] sm:$0xf]
        %v261 = vld [vmem:[%s215 + $0x2c] sm:$0xf]
        %v262 = vld [vmem:[%s215 + $0x30] sm:$0xf]
        %v263 = vld [vmem:[%s215 + $0x34] sm:$0xf]
        %v264 = vld [vmem:[%s215 + $0x38] sm:$0xf]
        %v265 = vld [vmem:[%s215 + $0x3c] sm:$0xf]
        %v282 = vunpack.c.l.b16 %v250
        %v283 = vunpack.c.l.b16 %v251
        %v284 = vunpack.c.l.b16 %v252
        %v285 = vunpack.c.l.b16 %v253
        %v286 = vunpack.c.l.b16 %v254
        %v287 = vunpack.c.l.b16 %v255
        %v288 = vunpack.c.l.b16 %v256
        %v289 = vunpack.c.l.b16 %v257
        %v290 = vunpack.c.l.b16 %v258
        %v291 = vunpack.c.l.b16 %v259
        %v292 = vunpack.c.l.b16 %v260
        %v293 = vunpack.c.l.b16 %v261
        %v294 = vunpack.c.l.b16 %v262
        %v295 = vunpack.c.l.b16 %v263
        %v296 = vunpack.c.l.b16 %v264
        %v297 = vunpack.c.l.b16 %v265
        %v298 = vpack.c.b16 %v283, %v282
        %v299 = vpack.c.b16 %v285, %v284
        %v300 = vpack.c.b16 %v287, %v286
        %v301 = vpack.c.b16 %v289, %v288
        %v302 = vpack.c.b16 %v291, %v290
        %v303 = vpack.c.b16 %v293, %v292
        %v304 = vpack.c.b16 %v295, %v294
        %v305 = vpack.c.b16 %v297, %v296
        %314 = vmatprep.subr.bf16.mxu0 0
        %315 = vmatpush1.bf16.msra.mxu0 %v305
        %316 = vmatprep.subr.bf16.mxu0 0
        %317 = vmatpush1.bf16.msra.mxu0 %v304
        %318 = vmatprep.subr.bf16.mxu0 0
        %319 = vmatpush1.bf16.msra.mxu0 %v303
        %320 = vmatprep.subr.bf16.mxu0 0
        %321 = vmatpush1.bf16.msra.mxu0 %v302
        %322 = vmatprep.subr.bf16.mxu0 0
        %323 = vmatpush1.bf16.msra.mxu0 %v301
        %324 = vmatprep.subr.bf16.mxu0 0
        %325 = vmatpush1.bf16.msra.mxu0 %v300
        %326 = vmatprep.subr.bf16.mxu0 0
        %327 = vmatpush1.bf16.msra.mxu0 %v299
        %328 = vmatprep.subr.bf16.mxu0 0
        %329 = vmatpush1.bf16.msra.mxu0 %v298
        %330 = vmatprep.subr.bf16.mxu0 0
        %331 = vmatpush2.bf16.msra.mxu0 0
        %332 = vmatprep.subr.bf16.mxu0 0
        %333 = vmatpush2.bf16.msra.mxu0 0
        %334 = vmatprep.subr.bf16.mxu0 0
        %335 = vmatpush2.bf16.msra.mxu0 0
        %336 = vmatprep.subr.bf16.mxu0 0
        %337 = vmatpush2.bf16.msra.mxu0 0
        %338 = vmatprep.subr.bf16.mxu0 0
        %339 = vmatpush2.bf16.msra.mxu0 0
        %340 = vmatprep.subr.bf16.mxu0 0
        %341 = vmatpush2.bf16.msra.mxu0 0
        %342 = vmatprep.subr.bf16.mxu0 0
        %343 = vmatpush2.bf16.msra.mxu0 0
        %344 = vmatprep.subr.bf16.mxu0 0
        %345 = vmatpush2.bf16.msra.mxu0 0
        %346 = vmatprep.mubr.bf16.mxu0 0
        %347 = vmatmul.mubr.bf16.gmra.mxu0 %v249
        %v348 = vpop.f32.mrf.mxu0
        %v349 = vadd.f32 0.0, %v348
        %v350 = vpop.f32.mrf.mxu0
        %v351 = vpop.f32.mrf.mxu0
        %v352 = vpop.f32.mrf.mxu0
        %353 = vdwg.mxu0
        %v354 = vadd.f32 %v248, %v349
        %355 = vst [vmem:[#allocation2] sm:$0xff] %v354
        %p356 = scmp.eq.s32.totalorder %s31, 1
        // Predicated region
        $region41: #{tpu_custom_call.1} parent=27 // pred_check
          %p357 = pneg %p356
        $region42: #{tpu_custom_call.1} parent=27 // pred_check_branch
          %359 = sbr.rel (%p357) target = $region44
        $region43: #{tpu_custom_call.1} parent=27 // pred_region
          %v360 = vld [vmem:[#allocation2] sm:$0xff]
          %v361 = vpack.c.bf16 %v360, %v360
          %362 = vst [vmem:[%s240] sm:$0xf] %v361
        $region44: #{tpu_custom_call.1} parent=27 // pred_fallthru
          _
        %s363 = sand.u32 %s118, 1
        %s364 = scalar_lea.sflag [#allocation5], %s363
        %s365 = sand.u32 %s118, 1
        %s366 = smul.addr %s365, 4
        %s367 = scalar_lea.vmem [#allocation8], %s366
        // Predicated region
        $region45: #{tpu_custom_call.1} parent=27 // pred_check
          %p368 = pneg %p128
        $region46: #{tpu_custom_call.1} parent=27 // pred_check_branch
          %370 = sbr.rel (%p368) target = $region48
        $region47: #{tpu_custom_call.1} parent=27 // pred_region
          %s372 = ssub.s32 64, 64
          %373 = vsyncadd %s364, %s372
          %s374 = smul.addr %s29, 2
          %s375 = sadd.s32 %s30, %s374
          %s376 = smul.addr %s28, 8
          %s377 = sadd.s32 %s375, %s376
          %s378 = smul.addr %s377, 64
          %s379 = scalar_lea.hbm %s2, %s378
          %s381 = sshll.u32 %s367, 4
          %s382 = int_to_ptr.vmem [resolvable:$true] %s381
          %384 = dma.vmem_to_hbm [thread:$0]  %s382, 64, %s379, %s364
        $region48: #{tpu_custom_call.1} parent=27 // pred_fallthru
          _
      $region28: #{tpu_custom_call.1} parent=5 // pred_fallthru
        _
      %p385 = scmp.le.s32.totalorder 2, %s17
      // Predicated region
      $region49: #{tpu_custom_call.1} parent=5 // pred_check
        %p386 = pneg %p385
      $region50: #{tpu_custom_call.1} parent=5 // pred_check_branch
        %388 = sbr.rel (%p386) target = $region52
      $region51: #{tpu_custom_call.1} parent=5 // pred_region
        %s389 = ssub.s32 %s17, 2
        // Predicated region
        $region53: #{tpu_custom_call.1} parent=51 // pred_check
          %p390 = pneg %p134
        $region54: #{tpu_custom_call.1} parent=51 // pred_check_branch
          %392 = sbr.rel (%p390) target = $region56
        $region55: #{tpu_custom_call.1} parent=51 // pred_region
          %s393 = sand.u32 %s119, 1
          %s394 = scalar_lea.sflag [#allocation5], %s393
          %s395 = sand.u32 %s119, 1
          %s396 = smul.addr %s395, 4
          %s397 = scalar_lea.vmem [#allocation8], %s396
          %398 = dma.done %s394, 64
        $region56: #{tpu_custom_call.1} parent=51 // pred_fallthru
          _
      $region52: #{tpu_custom_call.1} parent=5 // pred_fallthru
        _
    $region6: #{tpu_custom_call.1} parent=1 // loop_footer
      %s21 = sadd.s32 1, %s17
    $region7: #{tpu_custom_call.1} parent=1 // loop_footer_branch
      %16 = sbr.rel target = $region3
    $region8: #{tpu_custom_call.1} parent=1 // loop_exit
      _
    %399 = vsyncpa [#allocation4], 1
    %s400 = scalar_lea.sflag [#allocation4], 1
    %401 = vsyncpa %s400, 1
    %402 = vsyncpa [#allocation7], 1
    %s403 = scalar_lea.sflag [#allocation7], 1
    %404 = vsyncpa %s403, 1
    %405 = vsyncpa [#allocation5], 1
    %s406 = scalar_lea.sflag [#allocation5], 1
    %407 = vsyncpa %s406, 1

</llo_original>
